<compile_context>
chip_gen: v7x
topology: tpu7x:2x2x1
jax: 0.10.0
libtpu: 0.0.40
codegen_flags: <defaults>
</compile_context>

<pallas_src>
import jax
import jax.numpy as jnp
from jax.experimental import pallas as pl
from jax.experimental.pallas import tpu as pltpu


def _concat_emb_kernel(x_ref, emb_ref, o_ref):
    # x_ref:   (Bt, C,   Lt) tile
    # emb_ref: (1,  1,   Lt) shared positional embedding slice
    # o_ref:   (Bt, C+1, Lt) output tile
    bt, _, lt = x_ref.shape
    x = x_ref[...].astype(o_ref.dtype)
    e = jnp.broadcast_to(emb_ref[...].astype(o_ref.dtype), (bt, 1, lt))
    # One contiguous full-tile store (avoids a separate 1-sublane masked store for emb).
    o_ref[...] = jnp.concatenate([x, e], axis=1)


def _choose_tiles(B, C, L, itemsize, target_tile_bytes=4 * 1024 * 1024):
    """Pick (Bt, Lt) so each output tile is large (>= ~512 KB when possible) but stays
    well inside VMEM with double buffering on every TPU generation (incl. v7x 64 MiB)."""
    # --- L tile: lane-dense multiple of 128 that divides L, capped at 2048 lanes ---
    lt = L
    if L % 128 == 0 and L > 2048:
        cand = 2048
        while cand >= 128:
            if L % cand == 0:
                lt = cand
                break
            cand -= 128
        else:
            lt = L  # no nice divisor found; take full L (still lane-dense)
    # --- batch tile: largest divisor of B whose output tile fits the target budget ---
    per_b_bytes = (C + 1) * lt * itemsize
    bt = 1
    for cand in range(B, 0, -1):
        if B % cand == 0 and cand * per_b_bytes <= target_tile_bytes:
            bt = cand
            break
    # Keep >= 2 grid steps when there is real work, so v7x's two TensorCores both run.
    total_bytes = B * (C + 1) * L * itemsize
    if bt == B and B >= 2 and (L // lt) == 1 and total_bytes > (1 << 20):
        bt = max(1, B // 2)
        while B % bt != 0:
            bt -= 1
    return bt, lt


def trained_positional_embedding(x, emb):
    """Pallas implementation of TrainedPositionalEmbedding.forward (operation='concat')."""
    B, C, L = x.shape
    assert emb.shape == (1, 1, L)
    out_dtype = x.dtype
    itemsize = jnp.dtype(out_dtype).itemsize

    bt, lt = _choose_tiles(B, C, L, itemsize)
    grid = (B // bt, L // lt)

    # Pure HBM copy: bytes = read x + read emb + write out. No flops, no transcendentals.
    bytes_accessed = (B * C * L + L + B * (C + 1) * L) * itemsize

    return pl.pallas_call(
        _concat_emb_kernel,
        out_shape=jax.ShapeDtypeStruct((B, C + 1, L), out_dtype),
        grid_spec=pltpu.PrefetchScalarGridSpec(
            num_scalar_prefetch=0,
            grid=grid,
            in_specs=[
                pl.BlockSpec((bt, C, lt), lambda b, l: (b, 0, l)),
                pl.BlockSpec((1, 1, lt), lambda b, l: (0, 0, l)),
            ],
            out_specs=pl.BlockSpec((bt, C + 1, lt), lambda b, l: (b, 0, l)),
        ),
        compiler_params=pltpu.CompilerParams(
            dimension_semantics=("parallel", "parallel"),
            vmem_limit_bytes=64 * 1024 * 1024,
        ),
        cost_estimate=pl.CostEstimate(
            flops=0, transcendentals=0, bytes_accessed=bytes_accessed
        ),
    )(x, emb)


if __name__ == "__main__":
    # small shapes consistent with the module: batch=2, channels=4, seq_len=128
    B, C, L = 2, 4, 128
    key = jax.random.PRNGKey(0)
    k_x, k_emb = jax.random.split(key)

    x = jax.random.normal(k_x, (B, C, L), dtype=jnp.float32)
    # deterministic "trained" parameter (module __init__: torch.randn(1, 1, seq_len))
    emb = jax.random.normal(k_emb, (1, 1, L), dtype=jnp.float32)

    out = trained_positional_embedding(x, emb)
    out = jax.block_until_ready(out)

    # reference check against plain JAX
    ref = jnp.concatenate([x, jnp.broadcast_to(emb, (B, 1, L))], axis=1)
    assert out.shape == (B, C + 1, L)
    assert jnp.allclose(out, ref)

    print("KERNEL_OK")
</pallas_src>

<mosaic_0001>
module attributes {stable_mosaic.version = 11 : i64} {
  func.func @_concat_emb_kernel(%arg0: i32, %arg1: i32, %arg2: memref<2x4x128xf32, #tpu.memory_space<vmem>>, %arg3: memref<1x1x128xf32, #tpu.memory_space<vmem>>, %arg4: memref<2x5x128xf32, #tpu.memory_space<vmem>>) attributes {dimension_semantics = [#tpu.dimension_semantics<parallel>, #tpu.dimension_semantics<parallel>], iteration_bounds = array<i64: 1, 1>, scalar_prefetch = 0 : i64, scratch_operands = 0 : i64, tpu.core_type = #tpu.core_type<tc>, window_params = [{transform_indices = @transform_0, window_bounds = array<i64: 2, 4, 128>}, {transform_indices = @transform_1, window_bounds = array<i64: 1, 1, 128>}, {transform_indices = @transform_2, window_bounds = array<i64: 2, 5, 128>}]} {
    %c0 = arith.constant 0 : index
    %c0_0 = arith.constant 0 : index
    %c0_1 = arith.constant 0 : index
    %0 = vector.load %arg2[%c0, %c0_0, %c0_1] : memref<2x4x128xf32, #tpu.memory_space<vmem>>, vector<2x4x128xf32>
    %c0_2 = arith.constant 0 : index
    %c0_3 = arith.constant 0 : index
    %c0_4 = arith.constant 0 : index
    %1 = vector.load %arg3[%c0_2, %c0_3, %c0_4] : memref<1x1x128xf32, #tpu.memory_space<vmem>>, vector<1x1x128xf32>
    %2 = vector.shape_cast %1 : vector<1x1x128xf32> to vector<1x1x128xf32>
    %3 = vector.broadcast %2 : vector<1x1x128xf32> to vector<2x1x128xf32>
    %4 = tpu.concatenate %0, %3 in 1 : vector<2x4x128xf32>, vector<2x1x128xf32> -> vector<2x5x128xf32>
    %c0_5 = arith.constant 0 : index
    %c0_6 = arith.constant 0 : index
    %c0_7 = arith.constant 0 : index
    %5 = vector.load %arg4[%c0_5, %c0_6, %c0_7] : memref<2x5x128xf32, #tpu.memory_space<vmem>>, vector<2x5x128xf32>
    tpu.vector_store %arg4[%c0_5, %c0_6, %c0_7], %4 {strides = array<i32>} : memref<2x5x128xf32, #tpu.memory_space<vmem>>, vector<2x5x128xf32>,
    return
  }
  func.func @transform_0(%arg0: i32, %arg1: i32) -> (i32, i32, i32) {
    %c0_i32 = arith.constant 0 : i32
    %c0_i32_0 = arith.constant 0 : i32
    return %arg0, %c0_i32, %arg1 : i32, i32, i32
  }
  func.func @transform_1(%arg0: i32, %arg1: i32) -> (i32, i32, i32) {
    %c0_i32 = arith.constant 0 : i32
    %c0_i32_0 = arith.constant 0 : i32
    %c0_i32_1 = arith.constant 0 : i32
    return %c0_i32, %c0_i32_0, %arg1 : i32, i32, i32
  }
  func.func @transform_2(%arg0: i32, %arg1: i32) -> (i32, i32, i32) {
    %c0_i32 = arith.constant 0 : i32
    %c0_i32_0 = arith.constant 0 : i32
    return %arg0, %c0_i32, %arg1 : i32, i32, i32
  }
}

</mosaic_0001>

<llo_original>
// kernel: tpu_custom_call.1
$region0: #{tpu_custom_call.1}
  #allocation0 [shape = 'u32[]', space=smem, size = 0x4, offset = 0x4, fixed_abs, tag = 'smem constant byte address 0x4 - core index']
  #allocation1 [shape = 'u32[144,128]{1,0:T(1,128)}', space=vmem, size = 0x12000, scoped, tag = 'internal scratch']
  %s0 = inlined_call_operand.hbm [shape: f32[2,4,128], index: 0, kind: input, shape index: {}]
  %s1 = inlined_call_operand.hbm [shape: f32[1,1,128], index: 1, kind: input, shape index: {}]
  %s2 = inlined_call_operand.hbm [shape: f32[2,5,128], index: 2, kind: output, shape index: {}]
  %s3 = sld [smem:[#allocation0]]
  $region26: #{tpu_custom_call.1} parent=0
    _
  %s5 = ssub.s32 1, %s3
  %s6 = scalar_select 0, %s5, %s3
  $region1: #{tpu_custom_call.1} parent=0
    #allocation2 [shape = 'u8[4096]{0}', space=vmem, size = 0x1000, scoped, tag = 'input window, operand 0, single buffered']
    #allocation3 [shape = 's32[1]{0}', space=sflag, size = 0x4, scoped, tag = 'scoped memory for tpu_custom_call.1']
    #allocation4 [shape = 's32[1]{0}', space=sflag, size = 0x4, scoped, tag = 'scoped memory for tpu_custom_call.1']
    #allocation5 [shape = 'u8[512]{0}', space=vmem, size = 0x400, scoped, tag = 'input window, operand 1, single buffered']
    #allocation6 [shape = 's32[1]{0}', space=sflag, size = 0x4, scoped, tag = 'scoped memory for tpu_custom_call.1']
    #allocation7 [shape = 'u8[8192]{0}', space=vmem, size = 0x2000, scoped, tag = 'output window, operand 0, single buffered']
    %7 = vsyncpa [#allocation3], 0
    %8 = vsyncpa [#allocation6], 0
    %9 = vsyncpa [#allocation4], 0
    // Predicated region
    $region2: #{tpu_custom_call.1} parent=1 // pred_check
      _
    $region3: #{tpu_custom_call.1} parent=1 // pred_check_branch
      %11 = sbr.rel (0) target = $region5
    $region4: #{tpu_custom_call.1} parent=1 // pred_region
      %s13 = ssub.s32 128, 128
      %14 = vsyncadd [#allocation3], %s13
      %s15 = sshll.u32 [#allocation2], 4
      %s16 = int_to_ptr.vmem [resolvable:$true] %s15
      %21 = dma.hbm_to_vmem [thread:$0]  %s0, 128, %s16, [#allocation3], 64, 64, 4
    $region5: #{tpu_custom_call.1} parent=1 // pred_fallthru
      _
    // Predicated region
    $region6: #{tpu_custom_call.1} parent=1 // pred_check
      _
    $region7: #{tpu_custom_call.1} parent=1 // pred_check_branch
      %23 = sbr.rel (0) target = $region9
    $region8: #{tpu_custom_call.1} parent=1 // pred_region
      %s25 = ssub.s32 16, 16
      %26 = vsyncadd [#allocation6], %s25
      %s28 = sshll.u32 [#allocation5], 4
      %s29 = int_to_ptr.vmem [resolvable:$true] %s28
      %31 = dma.hbm_to_vmem [thread:$0]  %s1, 16, %s29, [#allocation6]
    $region9: #{tpu_custom_call.1} parent=1 // pred_fallthru
      _
    // Predicated region
    $region10: #{tpu_custom_call.1} parent=1 // pred_check
      _
    $region11: #{tpu_custom_call.1} parent=1 // pred_check_branch
      %33 = sbr.rel (0) target = $region13
    $region12: #{tpu_custom_call.1} parent=1 // pred_region
      %34 = dma.done [#allocation3], 128
    $region13: #{tpu_custom_call.1} parent=1 // pred_fallthru
      _
    // Predicated region
    $region14: #{tpu_custom_call.1} parent=1 // pred_check
      _
    $region15: #{tpu_custom_call.1} parent=1 // pred_check_branch
      %36 = sbr.rel (0) target = $region17
    $region16: #{tpu_custom_call.1} parent=1 // pred_region
      %37 = dma.done [#allocation6], 16
    $region17: #{tpu_custom_call.1} parent=1 // pred_fallthru
      _
    %v38 = vld [vmem:[#allocation2] sm:$0xf]
    %v39 = vld [vmem:[#allocation2 + $0x4] sm:$0xf]
    %v40 = vld [vmem:[#allocation5] sm:$0x1]
    %v42 = vlaneseq
    %v43 = vshrl.u32 %v42, 7
    %v44 = vsub.s32 0, %v43
    %v45 = vrot.slane %v40, %v44
    %vm47 = vcmask 1043456
    %v48 = vsel %vm47, %v38, %v45
    %v49 = vsel %vm47, %v39, %v45
    %50 = vst [vmem:[#allocation7] sm:$0x1f] %v48
    %51 = vst [vmem:[#allocation7 + $0x8] sm:$0x1f] %v49
    // Predicated region
    $region18: #{tpu_custom_call.1} parent=1 // pred_check
      _
    $region19: #{tpu_custom_call.1} parent=1 // pred_check_branch
      %53 = sbr.rel (0) target = $region21
    $region20: #{tpu_custom_call.1} parent=1 // pred_region
      %s55 = ssub.s32 256, 256
      %56 = vsyncadd [#allocation4], %s55
      %s57 = sshll.u32 [#allocation7], 4
      %s58 = int_to_ptr.vmem [resolvable:$true] %s57
      %63 = dma.vmem_to_hbm [thread:$0]  %s58, 256, %s2, [#allocation4], 128, 128, 8
    $region21: #{tpu_custom_call.1} parent=1 // pred_fallthru
      _
    // Predicated region
    $region22: #{tpu_custom_call.1} parent=1 // pred_check
      _
    $region23: #{tpu_custom_call.1} parent=1 // pred_check_branch
      %65 = sbr.rel (0) target = $region25
    $region24: #{tpu_custom_call.1} parent=1 // pred_region
      %66 = dma.done [#allocation4], 256
    $region25: #{tpu_custom_call.1} parent=1 // pred_fallthru
      _
    %67 = vsyncpa [#allocation3], 1
    %68 = vsyncpa [#allocation6], 1
    %69 = vsyncpa [#allocation4], 1

</llo_original>
